<compile_context>
chip_gen: v7x
topology: tpu7x:2x2x1
jax: 0.10.0
libtpu: 0.0.40
codegen_flags: <defaults>
</compile_context>

<pallas_src>
import functools

import numpy as np
import jax
import jax.numpy as jnp
from jax import lax
from jax.experimental import pallas as pl
from jax.experimental.pallas import tpu as pltpu


def _round_up(x, m):
    return (x + m - 1) // m * m


def _stats_kernel(cols_ref, w_ref, stats_ref):
    """PASS 1: per-tile matmul + partial BN sum / sum-of-squares (rows 0/1 of an (8, Cp) block)."""
    y = jnp.dot(cols_ref[...], w_ref[...], preferred_element_type=jnp.float32)  # (TM, Cp)
    stats_ref[0:1, :] = jnp.sum(y, axis=0, keepdims=True)
    stats_ref[1:2, :] = jnp.sum(y * y, axis=0, keepdims=True)
    # rows 2..7 of the per-tile stats block are never read by the wrapper.


def _fused_kernel(cols_ref, mask_ref, w_ref, bnp_ref, exp_ref, out_ref, *, c_in, ch3, k):
    """PASS 2: matmul + BN(scale,shift)+ReLU + 3x3/s2 max-pool, one lane-dense fused output block."""
    cols = cols_ref[...]                                                # (TM, K)

    # ---- conv branch: MXU matmul, then a single FMA + max (scale/shift precomputed in wrapper) ----
    y = jnp.dot(cols, w_ref[...], preferred_element_type=jnp.float32)   # (TM, Cp)
    scale = bnp_ref[0:1, :]                                             # zero on pool / padding lanes
    shift = bnp_ref[1:2, :]
    out_ref[...] = jnp.maximum(y * scale + shift, 0.0)                  # full-width lane-dense store

    # ---- pool branch: expand (TM,9) boundary mask to full width with one tiny one-hot matmul,
    #      apply it once, then running max over the 9 taps (<=2 lane-sparse taps live at a time).
    mask_full = jnp.dot(mask_ref[...], exp_ref[...],
                        preferred_element_type=jnp.float32)             # (TM, Kp)
    masked = cols + mask_full[:, :k]                                    # (TM, K)
    pool = masked[:, 0:c_in]
    for t in range(1, 9):
        pool = jnp.maximum(pool, masked[:, t * c_in:(t + 1) * c_in])
    out_ref[:, ch3:ch3 + c_in] = pool                                   # pool lanes of the fused block


def downsample_forward(x_nchw, w_oihw, bias=None, *, eps=1e-5, tile_m=1024):
    """Forward pass of DownsampleModule with training-mode BatchNorm statistics.

    `bias` is accepted for API parity with the PyTorch module but intentionally unused:
    a per-channel conv bias is cancelled exactly by BatchNorm2d(affine=False) in training mode.
    """
    del bias

    N, C_in, H, W = x_nchw.shape
    Ch3 = w_oihw.shape[0]
    Ho = (H + 2 - 3) // 2 + 1
    Wo = (W + 2 - 3) // 2 + 1
    M = N * Ho * Wo
    K = 9 * C_in
    Kp = _round_up(K, 128)
    Cout = Ch3 + C_in
    Cp = _round_up(Cout, 128)                    # lane-dense fused output width (conv + pool)

    # ---- tile size: multiple of 8, capped so double-buffered pass-2 streams fit v7x VMEM ----------
    row_bytes = 4 * (K + 9 + Cp)                 # streamed bytes per row in pass 2 (the heavier pass)
    budget = 20 * 1024 * 1024
    TM = _round_up(min(tile_m, max(M, 8)), 8)
    while TM > 256 and 2 * TM * row_bytes > budget:
        TM = _round_up(TM // 2, 8)
    M_pad = _round_up(M, TM)
    n_tiles = M_pad // TM

    # ---- im2col (pure-JAX glue): NCHW -> NHWC, zero pad, 9 strided taps, tap-major lanes ----------
    x = jnp.transpose(x_nchw, (0, 2, 3, 1)).astype(jnp.float32)
    xp = jnp.pad(x, ((0, 0), (1, 1), (1, 1), (0, 0)))
    patches = []
    for kh in range(3):
        for kw in range(3):
            patches.append(xp[:, kh:kh + 2 * Ho - 1:2, kw:kw + 2 * Wo - 1:2, :])
    cols = jnp.stack(patches, axis=3).reshape(M, K)                  # (M, 9*C_in), tap-major
    cols = jnp.pad(cols, ((0, M_pad - M), (0, 0)))                   # zero rows -> 0 stats contribution

    # ---- tiny (M, 9) boundary mask: 0.0 for valid taps, -1e30 for out-of-bounds --------------------
    oh = jnp.arange(Ho)
    ow = jnp.arange(Wo)
    vlist = []
    for kh in range(3):
        for kw in range(3):
            r = 2 * oh + kh - 1
            c = 2 * ow + kw - 1
            v = ((r >= 0) & (r < H))[:, None] & ((c >= 0) & (c < W))[None, :]
            vlist.append(v)
    valid = jnp.stack(vlist, axis=-1)                                # (Ho, Wo, 9)
    valid = jnp.broadcast_to(valid[None], (N, Ho, Wo, 9)).reshape(M, 9)
    mask9 = jnp.where(valid, 0.0, -1e30).astype(jnp.float32)
    mask9 = jnp.pad(mask9, ((0, M_pad - M), (0, 0)))                 # padded rows: harmless

    # ---- one-hot expansion matrix for full-width mask application (lane j <- tap j//C_in) ----------
    expand_np = np.zeros((9, Kp), np.float32)
    for t in range(9):
        expand_np[t, t * C_in:(t + 1) * C_in] = 1.0
    expand = jnp.asarray(expand_np)

    # ---- weights: (O, I, kh, kw) -> (kh, kw, I, O) -> (K, Cp), tap-major rows, zero pool lanes -----
    w_mat = jnp.transpose(w_oihw, (2, 3, 1, 0)).reshape(K, Ch3).astype(jnp.float32)
    w_big = jnp.pad(w_mat, ((0, 0), (0, Cp - Ch3)))

    vmem_limit = 48 * 1024 * 1024                # < v7x 64 MiB physical; ample for v5e/v6e
    cparams = pltpu.CompilerParams(dimension_semantics=("parallel",),   # megacore-safe on v7x
                                   vmem_limit_bytes=vmem_limit)

    # ---- pass 1: per-tile matmul + partial BN statistics (no y materialization) --------------------
    cost1 = pl.CostEstimate(flops=2 * M_pad * K * Cp + 3 * M_pad * Cp,
                            transcendentals=0,
                            bytes_accessed=4 * (M_pad * K + K * Cp + n_tiles * 8 * Cp))
    partial = pl.pallas_call(
        _stats_kernel,
        out_shape=jax.ShapeDtypeStruct((n_tiles * 8, Cp), jnp.float32),
        grid_spec=pltpu.PrefetchScalarGridSpec(
            num_scalar_prefetch=0,
            grid=(n_tiles,),
            in_specs=[pl.BlockSpec((TM, K), lambda i: (i, 0)),
                      pl.BlockSpec((K, Cp), lambda i: (0, 0))],
            out_specs=pl.BlockSpec((8, Cp), lambda i: (i, 0))),
        compiler_params=cparams,
        cost_estimate=cost1,
    )(cols, w_big)

    # ---- reduce partial stats + precompute BN scale/shift (tiny XLA work) --------------------------
    # NOTE: single-pass sum/sumsq variance in f32; fine at these magnitudes/M (checked vs reference),
    # switch to shifted/Welford partials if production sizes stress the 1e-4 tolerance.
    part = partial.reshape(n_tiles, 8, Cp)
    ssum = jnp.sum(part[:, 0, :], axis=0)
    ssq = jnp.sum(part[:, 1, :], axis=0)
    mean = ssum / M
    var = jnp.maximum(ssq / M - mean * mean, 0.0)
    inv_std = lax.rsqrt(var + eps)
    keep = jnp.arange(Cp) < Ch3                               # zero scale/shift on pool/padding lanes
    scale = jnp.where(keep, inv_std, 0.0)
    shift = jnp.where(keep, -mean * inv_std, 0.0)
    bnp = jnp.zeros((8, Cp), jnp.float32).at[0, :].set(scale).at[1, :].set(shift)

    # ---- pass 2: matmul + BN + ReLU + max-pool, fused lane-dense output -----------------------------
    cost2 = pl.CostEstimate(
        flops=2 * M_pad * K * Cp + 2 * M_pad * 9 * Kp + 4 * M_pad * Cp + 10 * M_pad * C_in,
        transcendentals=0,
        bytes_accessed=4 * (M_pad * (K + 9 + Cp) + K * Cp + 8 * Cp + 9 * Kp))
    fused = pl.pallas_call(
        functools.partial(_fused_kernel, c_in=C_in, ch3=Ch3, k=K),
        out_shape=jax.ShapeDtypeStruct((M_pad, Cp), jnp.float32),
        grid_spec=pltpu.PrefetchScalarGridSpec(
            num_scalar_prefetch=0,
            grid=(n_tiles,),
            in_specs=[pl.BlockSpec((TM, K), lambda i: (i, 0)),
                      pl.BlockSpec((TM, 9), lambda i: (i, 0)),
                      pl.BlockSpec((K, Cp), lambda i: (0, 0)),
                      pl.BlockSpec((8, Cp), lambda i: (0, 0)),
                      pl.BlockSpec((9, Kp), lambda i: (0, 0))],
            out_specs=pl.BlockSpec((TM, Cp), lambda i: (i, 0))),
        compiler_params=cparams,
        cost_estimate=cost2,
    )(cols, mask9, w_big, bnp, expand)

    # ---- assemble: drop row/lane padding, back to NCHW (concat already fused in-kernel) -------------
    out = fused[:M, :Cout].reshape(N, Ho, Wo, Cout)
    # TODO(synk): skip this transpose if the consumer accepts NHWC (saves a full output read+write).
    return jnp.transpose(out, (0, 3, 1, 2))


def _reference(x, w, b, *, eps=1e-5):
    conv = lax.conv_general_dilated(
        x, w, window_strides=(2, 2), padding=((1, 1), (1, 1)),
        dimension_numbers=("NCHW", "OIHW", "NCHW"))
    conv = conv + b.reshape(1, -1, 1, 1)
    mean = jnp.mean(conv, axis=(0, 2, 3), keepdims=True)
    var = jnp.mean((conv - mean) ** 2, axis=(0, 2, 3), keepdims=True)
    conv = jax.nn.relu((conv - mean) / jnp.sqrt(var + eps))
    pool = lax.reduce_window(x, -jnp.inf, lax.max, (1, 1, 3, 3), (1, 1, 2, 2),
                             padding=((0, 0), (0, 0), (1, 1), (1, 1)))
    return jnp.concatenate([conv, pool], axis=1)


if __name__ == "__main__":
    key = jax.random.PRNGKey(0)
    kx, kw, kb = jax.random.split(key, 3)

    N, C_in, Ch3, H, W = 2, 4, 8, 16, 16
    x = jax.random.normal(kx, (N, C_in, H, W), dtype=jnp.float32)
    w = jax.random.normal(kw, (Ch3, C_in, 3, 3), dtype=jnp.float32) * 0.1
    b = jax.random.normal(kb, (Ch3,), dtype=jnp.float32) * 0.1

    out = jax.block_until_ready(jax.jit(downsample_forward)(x, w, b))
    ref = jax.block_until_ready(_reference(x, w, b))

    assert out.shape == (N, Ch3 + C_in, H // 2, W // 2), out.shape
    max_err = float(jnp.max(jnp.abs(out - ref)))
    assert jnp.allclose(out, ref, atol=1e-4, rtol=1e-4), max_err
    print("KERNEL_OK")
</pallas_src>

<mosaic_0001>
module attributes {stable_mosaic.version = 11 : i64} {
  func.func @_stats_kernel(%arg0: i32, %arg1: memref<128x36xf32, #tpu.memory_space<vmem>>, %arg2: memref<36x128xf32, #tpu.memory_space<vmem>>, %arg3: memref<8x128xf32, #tpu.memory_space<vmem>>) attributes {dimension_semantics = [#tpu.dimension_semantics<parallel>], iteration_bounds = array<i64: 1>, scalar_prefetch = 0 : i64, scratch_operands = 0 : i64, tpu.core_type = #tpu.core_type<tc>, window_params = [{transform_indices = @transform_0, window_bounds = array<i64: 128, 36>}, {pipeline_mode = #tpu.pipeline_mode<synchronous>, transform_indices = @transform_1, window_bounds = array<i64: 36, 128>}, {transform_indices = @transform_2, window_bounds = array<i64: 8, 128>}]} {
    %c0 = arith.constant 0 : index
    %c0_0 = arith.constant 0 : index
    %0 = vector.load %arg1[%c0, %c0_0] : memref<128x36xf32, #tpu.memory_space<vmem>>, vector<128x36xf32>
    %c0_1 = arith.constant 0 : index
    %c0_2 = arith.constant 0 : index
    %1 = vector.load %arg2[%c0_1, %c0_2] : memref<36x128xf32, #tpu.memory_space<vmem>>, vector<36x128xf32>
    %cst = arith.constant dense<0.000000e+00> : vector<128x128xf32>
    %2 = tpu.matmul %0, %1, %cst {dimension_numbers = #tpu.dot_dimension_numbers<[1], [0], [0], [1], [0, 0, 1, 1], [], []>} : vector<128x36xf32>, vector<36x128xf32>, vector<128x128xf32> -> vector<128x128xf32>
    %cst_3 = arith.constant dense<0.000000e+00> : vector<128xf32>
    %3 = vector.multi_reduction <add>, %2, %cst_3 [0] : vector<128x128xf32> to vector<128xf32>
    %4 = vector.shape_cast %3 : vector<128xf32> to vector<1x128xf32>
    %c0_4 = arith.constant 0 : index
    %c0_5 = arith.constant 0 : index
    %5 = vector.load %arg3[%c0_4, %c0_5] : memref<8x128xf32, #tpu.memory_space<vmem>>, vector<1x128xf32>
    tpu.vector_store %arg3[%c0_4, %c0_5], %4 {strides = array<i32>} : memref<8x128xf32, #tpu.memory_space<vmem>>, vector<1x128xf32>,
    %6 = arith.mulf %2, %2 : vector<128x128xf32>
    %cst_6 = arith.constant dense<0.000000e+00> : vector<128xf32>
    %7 = vector.multi_reduction <add>, %6, %cst_6 [0] : vector<128x128xf32> to vector<128xf32>
    %8 = vector.shape_cast %7 : vector<128xf32> to vector<1x128xf32>
    %c1 = arith.constant 1 : index
    %c0_7 = arith.constant 0 : index
    %9 = vector.load %arg3[%c1, %c0_7] : memref<8x128xf32, #tpu.memory_space<vmem>>, vector<1x128xf32>
    tpu.vector_store %arg3[%c1, %c0_7], %8 {strides = array<i32>} : memref<8x128xf32, #tpu.memory_space<vmem>>, vector<1x128xf32>,
    return
  }
  func.func @transform_0(%arg0: i32) -> (i32, i32) {
    %c0_i32 = arith.constant 0 : i32
    %c0_i32_0 = arith.constant 0 : i32
    return %arg0, %c0_i32 : i32, i32
  }
  func.func @transform_1(%arg0: i32) -> (i32, i32) {
    %c0_i32 = arith.constant 0 : i32
    %c0_i32_0 = arith.constant 0 : i32
    %c0_i32_1 = arith.constant 0 : i32
    return %c0_i32, %c0_i32_0 : i32, i32
  }
  func.func @transform_2(%arg0: i32) -> (i32, i32) {
    %c0_i32 = arith.constant 0 : i32
    %c0_i32_0 = arith.constant 0 : i32
    return %arg0, %c0_i32 : i32, i32
  }
}

module attributes {stable_mosaic.version = 11 : i64} {
  func.func @_fused_kernel(%arg0: i32, %arg1: memref<128x36xf32, #tpu.memory_space<vmem>>, %arg2: memref<128x9xf32, #tpu.memory_space<vmem>>, %arg3: memref<36x128xf32, #tpu.memory_space<vmem>>, %arg4: memref<8x128xf32, #tpu.memory_space<vmem>>, %arg5: memref<9x128xf32, #tpu.memory_space<vmem>>, %arg6: memref<128x128xf32, #tpu.memory_space<vmem>>) attributes {dimension_semantics = [#tpu.dimension_semantics<parallel>], iteration_bounds = array<i64: 1>, scalar_prefetch = 0 : i64, scratch_operands = 0 : i64, tpu.core_type = #tpu.core_type<tc>, window_params = [{transform_indices = @transform_0, window_bounds = array<i64: 128, 36>}, {transform_indices = @transform_1, window_bounds = array<i64: 128, 9>}, {pipeline_mode = #tpu.pipeline_mode<synchronous>, transform_indices = @transform_2, window_bounds = array<i64: 36, 128>}, {pipeline_mode = #tpu.pipeline_mode<synchronous>, transform_indices = @transform_3, window_bounds = array<i64: 8, 128>}, {pipeline_mode = #tpu.pipeline_mode<synchronous>, transform_indices = @transform_4, window_bounds = array<i64: 9, 128>}, {transform_indices = @transform_5, window_bounds = array<i64: 128, 128>}]} {
    %c0 = arith.constant 0 : index
    %c0_0 = arith.constant 0 : index
    %0 = vector.load %arg1[%c0, %c0_0] : memref<128x36xf32, #tpu.memory_space<vmem>>, vector<128x36xf32>
    %c0_1 = arith.constant 0 : index
    %c0_2 = arith.constant 0 : index
    %1 = vector.load %arg3[%c0_1, %c0_2] : memref<36x128xf32, #tpu.memory_space<vmem>>, vector<36x128xf32>
    %cst = arith.constant dense<0.000000e+00> : vector<128x128xf32>
    %2 = tpu.matmul %0, %1, %cst {dimension_numbers = #tpu.dot_dimension_numbers<[1], [0], [0], [1], [0, 0, 1, 1], [], []>} : vector<128x36xf32>, vector<36x128xf32>, vector<128x128xf32> -> vector<128x128xf32>
    %c0_3 = arith.constant 0 : index
    %c0_4 = arith.constant 0 : index
    %3 = vector.load %arg4[%c0_3, %c0_4] : memref<8x128xf32, #tpu.memory_space<vmem>>, vector<1x128xf32>
    %c1 = arith.constant 1 : index
    %c0_5 = arith.constant 0 : index
    %4 = vector.load %arg4[%c1, %c0_5] : memref<8x128xf32, #tpu.memory_space<vmem>>, vector<1x128xf32>
    %5 = vector.broadcast %3 : vector<1x128xf32> to vector<128x128xf32>
    %6 = arith.mulf %2, %5 : vector<128x128xf32>
    %7 = vector.broadcast %4 : vector<1x128xf32> to vector<128x128xf32>
    %8 = arith.addf %6, %7 : vector<128x128xf32>
    %cst_6 = arith.constant 0.000000e+00 : f32
    %9 = vector.broadcast %cst_6 : f32 to vector<128x128xf32>
    %10 = arith.maximumf %8, %9 : vector<128x128xf32>
    %c0_7 = arith.constant 0 : index
    %c0_8 = arith.constant 0 : index
    %11 = vector.load %arg6[%c0_7, %c0_8] : memref<128x128xf32, #tpu.memory_space<vmem>>, vector<128x128xf32>
    tpu.vector_store %arg6[%c0_7, %c0_8], %10 {strides = array<i32>} : memref<128x128xf32, #tpu.memory_space<vmem>>, vector<128x128xf32>,
    %c0_9 = arith.constant 0 : index
    %c0_10 = arith.constant 0 : index
    %12 = vector.load %arg2[%c0_9, %c0_10] : memref<128x9xf32, #tpu.memory_space<vmem>>, vector<128x9xf32>
    %c0_11 = arith.constant 0 : index
    %c0_12 = arith.constant 0 : index
    %13 = vector.load %arg5[%c0_11, %c0_12] : memref<9x128xf32, #tpu.memory_space<vmem>>, vector<9x128xf32>
    %cst_13 = arith.constant dense<0.000000e+00> : vector<128x128xf32>
    %14 = tpu.matmul %12, %13, %cst_13 {dimension_numbers = #tpu.dot_dimension_numbers<[1], [0], [0], [1], [0, 0, 1, 1], [], []>} : vector<128x9xf32>, vector<9x128xf32>, vector<128x128xf32> -> vector<128x128xf32>
    %15 = vector.extract_strided_slice %14 {offsets = [0, 0], sizes = [128, 36], strides = [1, 1]} : vector<128x128xf32> to vector<128x36xf32>
    %16 = arith.addf %0, %15 : vector<128x36xf32>
    %17 = vector.extract_strided_slice %16 {offsets = [0, 0], sizes = [128, 4], strides = [1, 1]} : vector<128x36xf32> to vector<128x4xf32>
    %18 = vector.extract_strided_slice %16 {offsets = [0, 4], sizes = [128, 4], strides = [1, 1]} : vector<128x36xf32> to vector<128x4xf32>
    %19 = arith.maximumf %17, %18 : vector<128x4xf32>
    %20 = vector.extract_strided_slice %16 {offsets = [0, 8], sizes = [128, 4], strides = [1, 1]} : vector<128x36xf32> to vector<128x4xf32>
    %21 = arith.maximumf %19, %20 : vector<128x4xf32>
    %22 = vector.extract_strided_slice %16 {offsets = [0, 12], sizes = [128, 4], strides = [1, 1]} : vector<128x36xf32> to vector<128x4xf32>
    %23 = arith.maximumf %21, %22 : vector<128x4xf32>
    %24 = vector.extract_strided_slice %16 {offsets = [0, 16], sizes = [128, 4], strides = [1, 1]} : vector<128x36xf32> to vector<128x4xf32>
    %25 = arith.maximumf %23, %24 : vector<128x4xf32>
    %26 = vector.extract_strided_slice %16 {offsets = [0, 20], sizes = [128, 4], strides = [1, 1]} : vector<128x36xf32> to vector<128x4xf32>
    %27 = arith.maximumf %25, %26 : vector<128x4xf32>
    %28 = vector.extract_strided_slice %16 {offsets = [0, 24], sizes = [128, 4], strides = [1, 1]} : vector<128x36xf32> to vector<128x4xf32>
    %29 = arith.maximumf %27, %28 : vector<128x4xf32>
    %30 = vector.extract_strided_slice %16 {offsets = [0, 28], sizes = [128, 4], strides = [1, 1]} : vector<128x36xf32> to vector<128x4xf32>
    %31 = arith.maximumf %29, %30 : vector<128x4xf32>
    %32 = vector.extract_strided_slice %16 {offsets = [0, 32], sizes = [128, 4], strides = [1, 1]} : vector<128x36xf32> to vector<128x4xf32>
    %33 = arith.maximumf %31, %32 : vector<128x4xf32>
    %c0_14 = arith.constant 0 : index
    %c8 = arith.constant 8 : index
    %34 = vector.load %arg6[%c0_14, %c8] : memref<128x128xf32, #tpu.memory_space<vmem>>, vector<128x4xf32>
    tpu.vector_store %arg6[%c0_14, %c8], %33 {strides = array<i32>} : memref<128x128xf32, #tpu.memory_space<vmem>>, vector<128x4xf32>,
    return
  }
  func.func @transform_0(%arg0: i32) -> (i32, i32) {
    %c0_i32 = arith.constant 0 : i32
    %c0_i32_0 = arith.constant 0 : i32
    return %arg0, %c0_i32 : i32, i32
  }
  func.func @transform_1(%arg0: i32) -> (i32, i32) {
    %c0_i32 = arith.constant 0 : i32
    %c0_i32_0 = arith.constant 0 : i32
    return %arg0, %c0_i32 : i32, i32
  }
  func.func @transform_2(%arg0: i32) -> (i32, i32) {
    %c0_i32 = arith.constant 0 : i32
    %c0_i32_0 = arith.constant 0 : i32
    %c0_i32_1 = arith.constant 0 : i32
    return %c0_i32, %c0_i32_0 : i32, i32
  }
  func.func @transform_3(%arg0: i32) -> (i32, i32) {
    %c0_i32 = arith.constant 0 : i32
    %c0_i32_0 = arith.constant 0 : i32
    %c0_i32_1 = arith.constant 0 : i32
    return %c0_i32, %c0_i32_0 : i32, i32
  }
  func.func @transform_4(%arg0: i32) -> (i32, i32) {
    %c0_i32 = arith.constant 0 : i32
    %c0_i32_0 = arith.constant 0 : i32
    %c0_i32_1 = arith.constant 0 : i32
    return %c0_i32, %c0_i32_0 : i32, i32
  }
  func.func @transform_5(%arg0: i32) -> (i32, i32) {
    %c0_i32 = arith.constant 0 : i32
    %c0_i32_0 = arith.constant 0 : i32
    return %arg0, %c0_i32 : i32, i32
  }
}

</mosaic_0001>

<llo_original>
// kernel: downsample_forward.2
$region0: #{downsample_forward.2}
  #allocation0 [shape = 'u32[]', space=smem, size = 0x4, offset = 0x4, fixed_abs, tag = 'smem constant byte address 0x4 - core index']
  #allocation1 [shape = 'u32[144,128]{1,0:T(1,128)}', space=vmem, size = 0x12000, scoped, tag = 'internal scratch']
  %s0 = inlined_call_operand.vmem [shape: f32[128,36], index: 0, kind: input, shape index: {}]
  %s1 = inlined_call_operand.vmem [shape: f32[36,128], index: 1, kind: input, shape index: {}]
  %s2 = inlined_call_operand.vmem [shape: f32[8,128], index: 2, kind: output, shape index: {}]
  %s3 = sld [smem:[#allocation0]]
  $region18: #{downsample_forward.2} parent=0
    _
  %s5 = ssub.s32 1, %s3
  %s6 = scalar_select 0, %s5, %s3
  // Predicated region
  $region2: #{downsample_forward.2} parent=0 // pred_check
    _
  $region3: #{downsample_forward.2} parent=0 // pred_check_branch
    %8 = sbr.rel (0) target = $region5
  $region4: #{downsample_forward.2} parent=0 // pred_region
    _
  $region5: #{downsample_forward.2} parent=0 // pred_fallthru
    _
  // Predicated region
  $region6: #{downsample_forward.2} parent=0 // pred_check
    _
  $region7: #{downsample_forward.2} parent=0 // pred_check_branch
    %10 = sbr.rel (0) target = $region9
  $region8: #{downsample_forward.2} parent=0 // pred_region
    _
  $region9: #{downsample_forward.2} parent=0 // pred_fallthru
    _
  %v11 = vld [vmem:[%s0] sm:$0xff]
  %v12 = vld [vmem:[%s0 + $0x8] sm:$0xff]
  %v13 = vld [vmem:[%s0 + $0x10] sm:$0xff]
  %v14 = vld [vmem:[%s0 + $0x18] sm:$0xff]
  %v15 = vld [vmem:[%s0 + $0x20] sm:$0xff]
  %v16 = vld [vmem:[%s0 + $0x28] sm:$0xff]
  %v17 = vld [vmem:[%s0 + $0x30] sm:$0xff]
  %v18 = vld [vmem:[%s0 + $0x38] sm:$0xff]
  %v19 = vld [vmem:[%s0 + $0x40] sm:$0xff]
  %v20 = vld [vmem:[%s0 + $0x48] sm:$0xff]
  %v21 = vld [vmem:[%s0 + $0x50] sm:$0xff]
  %v22 = vld [vmem:[%s0 + $0x58] sm:$0xff]
  %v23 = vld [vmem:[%s0 + $0x60] sm:$0xff]
  %v24 = vld [vmem:[%s0 + $0x68] sm:$0xff]
  %v25 = vld [vmem:[%s0 + $0x70] sm:$0xff]
  %v26 = vld [vmem:[%s0 + $0x78] sm:$0xff]
  %v27 = vld [vmem:[%s1] sm:$0xff]
  %v28 = vld [vmem:[%s1 + $0x8] sm:$0xff]
  %v29 = vld [vmem:[%s1 + $0x10] sm:$0xff]
  %v30 = vld [vmem:[%s1 + $0x18] sm:$0xff]
  %v31 = vld [vmem:[%s1 + $0x20] sm:$0xf]
  %vm32 = vcmask 293888
  %v34 = vsel %vm32, %v11, 0
  %v37 = vsel %vm32, %v12, 0
  %v40 = vsel %vm32, %v13, 0
  %v43 = vsel %vm32, %v14, 0
  %v46 = vsel %vm32, %v15, 0
  %v49 = vsel %vm32, %v16, 0
  %v52 = vsel %vm32, %v17, 0
  %v55 = vsel %vm32, %v18, 0
  %v58 = vsel %vm32, %v19, 0
  %v61 = vsel %vm32, %v20, 0
  %v64 = vsel %vm32, %v21, 0
  %v67 = vsel %vm32, %v22, 0
  %v70 = vsel %vm32, %v23, 0
  %v73 = vsel %vm32, %v24, 0
  %v76 = vsel %vm32, %v25, 0
  %v79 = vsel %vm32, %v26, 0
  %vm81 = vcmask 1043456
  %v83 = vsel %vm81, %v31, 0
  %85 = vmatprep.subr.mxu0 0.0
  %86 = vmatpush1.msra.mxu0 %v27
  %87 = vmatprep.subr.mxu0 0.0
  %88 = vmatpush1.msra.mxu0 %v28
  %89 = vmatprep.subr.mxu0 0.0
  %90 = vmatpush1.msra.mxu0 %v29
  %91 = vmatprep.subr.mxu0 0.0
  %92 = vmatpush1.msra.mxu0 %v30
  %93 = vmatprep.subr.mxu0 0.0
  %94 = vmatpush1.msra.mxu0 %v83
  %95 = vmatprep.subr.mxu0 0.0
  %96 = vmatpush1.msra.mxu0 0.0
  %97 = vmatprep.subr.mxu0 0.0
  %98 = vmatpush1.msra.mxu0 0.0
  %99 = vmatprep.subr.mxu0 0.0
  %100 = vmatpush1.msra.mxu0 0.0
  %101 = vmatprep.subr.mxu0 0.0
  %102 = vmatpush1.msra.mxu0 0.0
  %103 = vmatprep.subr.mxu0 0.0
  %104 = vmatpush1.msra.mxu0 0.0
  %105 = vmatprep.subr.mxu0 0.0
  %106 = vmatpush1.msra.mxu0 0.0
  %107 = vmatprep.subr.mxu0 0.0
  %108 = vmatpush1.msra.mxu0 0.0
  %109 = vmatprep.subr.mxu0 0.0
  %110 = vmatpush1.msra.mxu0 0.0
  %111 = vmatprep.subr.mxu0 0.0
  %112 = vmatpush1.msra.mxu0 0.0
  %113 = vmatprep.subr.mxu0 0.0
  %114 = vmatpush1.msra.mxu0 0.0
  %115 = vmatprep.subr.mxu0 0.0
  %116 = vmatpush1.msra.mxu0 0.0
  %117 = vmatprep.subr.mxu0 0.0
  %118 = vmatpush1.msra.mxu0 0.0
  %119 = vmatprep.subr.mxu0 0.0
  %120 = vmatpush1.msra.mxu0 0.0
  %121 = vmatprep.subr.mxu0 0.0
  %122 = vmatpush1.msra.mxu0 0.0
  %123 = vmatprep.subr.mxu0 0.0
  %124 = vmatpush1.msra.mxu0 0.0
  %125 = vmatprep.subr.mxu0 0.0
  %126 = vmatpush1.msra.mxu0 0.0
  %127 = vmatprep.subr.mxu0 0.0
  %128 = vmatpush1.msra.mxu0 0.0
  %129 = vmatprep.subr.mxu0 0.0
  %130 = vmatpush1.msra.mxu0 0.0
  %131 = vmatprep.subr.mxu0 0.0
  %132 = vmatpush1.msra.mxu0 0.0
  %133 = vmatprep.subr.mxu0 0.0
  %134 = vmatpush1.msra.mxu0 0.0
  %135 = vmatprep.subr.mxu0 0.0
  %136 = vmatpush1.msra.mxu0 0.0
  %137 = vmatprep.subr.mxu0 0.0
  %138 = vmatpush1.msra.mxu0 0.0
  %139 = vmatprep.subr.mxu0 0.0
  %140 = vmatpush1.msra.mxu0 0.0
  %141 = vmatprep.subr.mxu0 0.0
  %142 = vmatpush1.msra.mxu0 0.0
  %143 = vmatprep.subr.mxu0 0.0
  %144 = vmatpush1.msra.mxu0 0.0
  %145 = vmatprep.subr.mxu0 0.0
  %146 = vmatpush1.msra.mxu0 0.0
  %147 = vmatprep.subr.mxu0 0.0
  %148 = vmatpush1.msra.mxu0 0.0
  %149 = vmatprep.mubr.f32.mxu0 0.0
  %150 = vmatmul.mubr.f32.gmra.mrb[0].mxu0 %v34
  %v151 = vpop.f32.mrb[0].mxu0
  %v152 = vadd.f32 0.0, %v151
  %v153 = vpop.f32.mrb[0].mxu0
  %154 = vmatprep.mubr.f32.mxu0 0.0
  %155 = vmatmul.mubr.f32.gmra.mrb[0].mxu0 %v37
  %v156 = vpop.f32.mrb[0].mxu0
  %v157 = vadd.f32 0.0, %v156
  %v158 = vpop.f32.mrb[0].mxu0
  %159 = vmatprep.mubr.f32.mxu0 0.0
  %160 = vmatmul.mubr.f32.gmra.mrb[0].mxu0 %v40
  %v161 = vpop.f32.mrb[0].mxu0
  %v162 = vadd.f32 0.0, %v161
  %v163 = vpop.f32.mrb[0].mxu0
  %164 = vmatprep.mubr.f32.mxu0 0.0
  %165 = vmatmul.mubr.f32.gmra.mrb[0].mxu0 %v43
  %v166 = vpop.f32.mrb[0].mxu0
  %v167 = vadd.f32 0.0, %v166
  %v168 = vpop.f32.mrb[0].mxu0
  %169 = vmatprep.mubr.f32.mxu0 0.0
  %170 = vmatmul.mubr.f32.gmra.mrb[0].mxu0 %v46
  %v171 = vpop.f32.mrb[0].mxu0
  %v172 = vadd.f32 0.0, %v171
  %v173 = vpop.f32.mrb[0].mxu0
  %174 = vmatprep.mubr.f32.mxu0 0.0
  %175 = vmatmul.mubr.f32.gmra.mrb[0].mxu0 %v49
  %v176 = vpop.f32.mrb[0].mxu0
  %v177 = vadd.f32 0.0, %v176
  %v178 = vpop.f32.mrb[0].mxu0
  %179 = vmatprep.mubr.f32.mxu0 0.0
  %180 = vmatmul.mubr.f32.gmra.mrb[0].mxu0 %v52
  %v181 = vpop.f32.mrb[0].mxu0
  %v182 = vadd.f32 0.0, %v181
  %v183 = vpop.f32.mrb[0].mxu0
  %184 = vmatprep.mubr.f32.mxu0 0.0
  %185 = vmatmul.mubr.f32.gmra.mrb[0].mxu0 %v55
  %v186 = vpop.f32.mrb[0].mxu0
  %v187 = vadd.f32 0.0, %v186
  %v188 = vpop.f32.mrb[0].mxu0
  %189 = vmatprep.mubr.f32.mxu0 0.0
  %190 = vmatmul.mubr.f32.gmra.mrb[0].mxu0 %v58
  %v191 = vpop.f32.mrb[0].mxu0
  %v192 = vadd.f32 0.0, %v191
  %v193 = vpop.f32.mrb[0].mxu0
  %194 = vmatprep.mubr.f32.mxu0 0.0
  %195 = vmatmul.mubr.f32.gmra.mrb[0].mxu0 %v61
  %v196 = vpop.f32.mrb[0].mxu0
  %v197 = vadd.f32 0.0, %v196
  %v198 = vpop.f32.mrb[0].mxu0
  %199 = vmatprep.mubr.f32.mxu0 0.0
  %200 = vmatmul.mubr.f32.gmra.mrb[0].mxu0 %v64
  %v201 = vpop.f32.mrb[0].mxu0
  %v202 = vadd.f32 0.0, %v201
  %v203 = vpop.f32.mrb[0].mxu0
  %204 = vmatprep.mubr.f32.mxu0 0.0
  %205 = vmatmul.mubr.f32.gmra.mrb[0].mxu0 %v67
  %v206 = vpop.f32.mrb[0].mxu0
  %v207 = vadd.f32 0.0, %v206
  %v208 = vpop.f32.mrb[0].mxu0
  %209 = vmatprep.mubr.f32.mxu0 0.0
  %210 = vmatmul.mubr.f32.gmra.mrb[0].mxu0 %v70
  %v211 = vpop.f32.mrb[0].mxu0
  %v212 = vadd.f32 0.0, %v211
  %v213 = vpop.f32.mrb[0].mxu0
  %214 = vmatprep.mubr.f32.mxu0 0.0
  %215 = vmatmul.mubr.f32.gmra.mrb[0].mxu0 %v73
  %v216 = vpop.f32.mrb[0].mxu0
  %v217 = vadd.f32 0.0, %v216
  %v218 = vpop.f32.mrb[0].mxu0
  %219 = vmatprep.mubr.f32.mxu0 0.0
  %220 = vmatmul.mubr.f32.gmra.mrb[0].mxu0 %v76
  %v221 = vpop.f32.mrb[0].mxu0
  %v222 = vadd.f32 0.0, %v221
  %v223 = vpop.f32.mrb[0].mxu0
  %224 = vmatprep.mubr.f32.mxu0 0.0
  %225 = vmatmul.mubr.f32.gmra.mrb[0].mxu0 %v79
  %v226 = vpop.f32.mrb[0].mxu0
  %v227 = vadd.f32 0.0, %v226
  %v228 = vpop.f32.mrb[0].mxu0
  %229 = vdwg.mxu0
  %v230 = vadd.f32 %v152, %v157
  %v231 = vadd.f32 %v230, %v162
  %v232 = vadd.f32 %v231, %v167
  %v233 = vadd.f32 %v232, %v172
  %v234 = vadd.f32 %v233, %v177
  %v235 = vadd.f32 %v234, %v182
  %v236 = vadd.f32 %v235, %v187
  %v237 = vadd.f32 %v236, %v192
  %v238 = vadd.f32 %v237, %v197
  %v239 = vadd.f32 %v238, %v202
  %v240 = vadd.f32 %v239, %v207
  %v241 = vadd.f32 %v240, %v212
  %v242 = vadd.f32 %v241, %v217
  %v243 = vadd.f32 %v242, %v222
  %v244 = vadd.f32 %v243, %v227
  %v245 = vrot.slane %v244, 4
  %v246 = vadd.f32 %v244, %v245
  %v247 = vrot.slane %v246, 2
  %v248 = vadd.f32 %v246, %v247
  %v249 = vrot.slane %v248, 1
  %v250 = vadd.f32 %v248, %v249
  %251 = vst [vmem:[%s2] sm:$0x1] %v250
  %v252 = vmul.f32 %v152, %v152
  %v253 = vmul.f32 %v157, %v157
  %v254 = vmul.f32 %v162, %v162
  %v255 = vmul.f32 %v167, %v167
  %v256 = vmul.f32 %v172, %v172
  %v257 = vmul.f32 %v177, %v177
  %v258 = vmul.f32 %v182, %v182
  %v259 = vmul.f32 %v187, %v187
  %v260 = vmul.f32 %v192, %v192
  %v261 = vmul.f32 %v197, %v197
  %v262 = vmul.f32 %v202, %v202
  %v263 = vmul.f32 %v207, %v207
  %v264 = vmul.f32 %v212, %v212
  %v265 = vmul.f32 %v217, %v217
  %v266 = vmul.f32 %v222, %v222
  %v267 = vmul.f32 %v227, %v227
  %v268 = vadd.f32 %v252, %v253
  %v269 = vadd.f32 %v268, %v254
  %v270 = vadd.f32 %v269, %v255
  %v271 = vadd.f32 %v270, %v256
  %v272 = vadd.f32 %v271, %v257
  %v273 = vadd.f32 %v272, %v258
  %v274 = vadd.f32 %v273, %v259
  %v275 = vadd.f32 %v274, %v260
  %v276 = vadd.f32 %v275, %v261
  %v277 = vadd.f32 %v276, %v262
  %v278 = vadd.f32 %v277, %v263
  %v279 = vadd.f32 %v278, %v264
  %v280 = vadd.f32 %v279, %v265
  %v281 = vadd.f32 %v280, %v266
  %v282 = vadd.f32 %v281, %v267
  %v283 = vrot.slane %v282, 4
  %v284 = vadd.f32 %v282, %v283
  %v285 = vrot.slane %v284, 2
  %v286 = vadd.f32 %v284, %v285
  %v287 = vrot.slane %v286, 1
  %v288 = vadd.f32 %v286, %v287
  %289 = vst [vmem:[%s2 + $0x1] sm:$0x1] %v288
  // Predicated region
  $region10: #{downsample_forward.2} parent=0 // pred_check
    _
  $region11: #{downsample_forward.2} parent=0 // pred_check_branch
    %291 = sbr.rel (0) target = $region13
  $region12: #{downsample_forward.2} parent=0 // pred_region
    _
  $region13: #{downsample_forward.2} parent=0 // pred_fallthru
    _
  // Predicated region
  $region14: #{downsample_forward.2} parent=0 // pred_check
    _
  $region15: #{downsample_forward.2} parent=0 // pred_check_branch
    %293 = sbr.rel (0) target = $region17
  $region16: #{downsample_forward.2} parent=0 // pred_region
    _
  $region17: #{downsample_forward.2} parent=0 // pred_fallthru
    _

// kernel: downsample_forward.3
$region0: #{downsample_forward.3}
  #allocation0 [shape = 'u32[]', space=smem, size = 0x4, offset = 0x4, fixed_abs, tag = 'smem constant byte address 0x4 - core index']
  #allocation1 [shape = 'u32[144,128]{1,0:T(1,128)}', space=vmem, size = 0x12000, scoped, tag = 'internal scratch']
  %s0 = inlined_call_operand.vmem [shape: f32[128,36], index: 0, kind: input, shape index: {}]
  %s1 = inlined_call_operand.vmem [shape: f32[128,9], index: 1, kind: input, shape index: {}]
  %s2 = inlined_call_operand.vmem [shape: f32[36,128], index: 2, kind: input, shape index: {}]
  %s3 = inlined_call_operand.vmem [shape: f32[8,128], index: 3, kind: input, shape index: {}]
  %s4 = inlined_call_operand.vmem [shape: f32[9,128], index: 4, kind: input, shape index: {}]
  %s5 = inlined_call_operand.hbm [shape: f32[128,128], index: 5, kind: output, shape index: {}]
  %s6 = sld [smem:[#allocation0]]
  $region30: #{downsample_forward.3} parent=0
    _
  %s8 = ssub.s32 1, %s6
  %s9 = scalar_select 0, %s8, %s6
  $region1: #{downsample_forward.3} parent=0
    #allocation2 [shape = 'u8[65536]{0}', space=vmem, size = 0x10000, scoped, tag = 'output window, operand 0, single buffered']
    #allocation3 [shape = 's32[1]{0}', space=sflag, size = 0x4, scoped, tag = 'scoped memory for downsample_forward.3']
    %10 = vsyncpa [#allocation3], 0
    // Predicated region
    $region2: #{downsample_forward.3} parent=1 // pred_check
      _
    $region3: #{downsample_forward.3} parent=1 // pred_check_branch
      %12 = sbr.rel (0) target = $region5
    $region4: #{downsample_forward.3} parent=1 // pred_region
      _
    $region5: #{downsample_forward.3} parent=1 // pred_fallthru
      _
    // Predicated region
    $region6: #{downsample_forward.3} parent=1 // pred_check
      _
    $region7: #{downsample_forward.3} parent=1 // pred_check_branch
      %14 = sbr.rel (0) target = $region9
    $region8: #{downsample_forward.3} parent=1 // pred_region
      _
    $region9: #{downsample_forward.3} parent=1 // pred_fallthru
      _
    // Predicated region
    $region10: #{downsample_forward.3} parent=1 // pred_check
      _
    $region11: #{downsample_forward.3} parent=1 // pred_check_branch
      %16 = sbr.rel (0) target = $region13
    $region12: #{downsample_forward.3} parent=1 // pred_region
      _
    $region13: #{downsample_forward.3} parent=1 // pred_fallthru
      _
    // Predicated region
    $region14: #{downsample_forward.3} parent=1 // pred_check
      _
    $region15: #{downsample_forward.3} parent=1 // pred_check_branch
      %18 = sbr.rel (0) target = $region17
    $region16: #{downsample_forward.3} parent=1 // pred_region
      _
    $region17: #{downsample_forward.3} parent=1 // pred_fallthru
      _
    // Predicated region
    $region18: #{downsample_forward.3} parent=1 // pred_check
      _
    $region19: #{downsample_forward.3} parent=1 // pred_check_branch
      %20 = sbr.rel (0) target = $region21
    $region20: #{downsample_forward.3} parent=1 // pred_region
      _
    $region21: #{downsample_forward.3} parent=1 // pred_fallthru
      _
    %v21 = vld [vmem:[%s0] sm:$0xff]
    %v22 = vld [vmem:[%s0 + $0x8] sm:$0xff]
    %v23 = vld [vmem:[%s0 + $0x10] sm:$0xff]
    %v24 = vld [vmem:[%s0 + $0x18] sm:$0xff]
    %v25 = vld [vmem:[%s0 + $0x20] sm:$0xff]
    %v26 = vld [vmem:[%s0 + $0x28] sm:$0xff]
    %v27 = vld [vmem:[%s0 + $0x30] sm:$0xff]
    %v28 = vld [vmem:[%s0 + $0x38] sm:$0xff]
    %v29 = vld [vmem:[%s0 + $0x40] sm:$0xff]
    %v30 = vld [vmem:[%s0 + $0x48] sm:$0xff]
    %v31 = vld [vmem:[%s0 + $0x50] sm:$0xff]
    %v32 = vld [vmem:[%s0 + $0x58] sm:$0xff]
    %v33 = vld [vmem:[%s0 + $0x60] sm:$0xff]
    %v34 = vld [vmem:[%s0 + $0x68] sm:$0xff]
    %v35 = vld [vmem:[%s0 + $0x70] sm:$0xff]
    %v36 = vld [vmem:[%s0 + $0x78] sm:$0xff]
    %v37 = vld [vmem:[%s2] sm:$0xff]
    %v38 = vld [vmem:[%s2 + $0x8] sm:$0xff]
    %v39 = vld [vmem:[%s2 + $0x10] sm:$0xff]
    %v40 = vld [vmem:[%s2 + $0x18] sm:$0xff]
    %v41 = vld [vmem:[%s2 + $0x20] sm:$0xf]
    %vm42 = vcmask 293888
    %v44 = vsel %vm42, %v21, 0
    %v47 = vsel %vm42, %v22, 0
    %v50 = vsel %vm42, %v23, 0
    %v53 = vsel %vm42, %v24, 0
    %v56 = vsel %vm42, %v25, 0
    %v59 = vsel %vm42, %v26, 0
    %v62 = vsel %vm42, %v27, 0
    %v65 = vsel %vm42, %v28, 0
    %v68 = vsel %vm42, %v29, 0
    %v71 = vsel %vm42, %v30, 0
    %v74 = vsel %vm42, %v31, 0
    %v77 = vsel %vm42, %v32, 0
    %v80 = vsel %vm42, %v33, 0
    %v83 = vsel %vm42, %v34, 0
    %v86 = vsel %vm42, %v35, 0
    %v89 = vsel %vm42, %v36, 0
    %vm91 = vcmask 1043456
    %v93 = vsel %vm91, %v41, 0
    %95 = vmatprep.subr.mxu0 0.0
    %96 = vmatpush1.msra.mxu0 %v37
    %97 = vmatprep.subr.mxu0 0.0
    %98 = vmatpush1.msra.mxu0 %v38
    %99 = vmatprep.subr.mxu0 0.0
    %100 = vmatpush1.msra.mxu0 %v39
    %101 = vmatprep.subr.mxu0 0.0
    %102 = vmatpush1.msra.mxu0 %v40
    %103 = vmatprep.subr.mxu0 0.0
    %104 = vmatpush1.msra.mxu0 %v93
    %105 = vmatprep.subr.mxu0 0.0
    %106 = vmatpush1.msra.mxu0 0.0
    %107 = vmatprep.subr.mxu0 0.0
    %108 = vmatpush1.msra.mxu0 0.0
    %109 = vmatprep.subr.mxu0 0.0
    %110 = vmatpush1.msra.mxu0 0.0
    %111 = vmatprep.subr.mxu0 0.0
    %112 = vmatpush1.msra.mxu0 0.0
    %113 = vmatprep.subr.mxu0 0.0
    %114 = vmatpush1.msra.mxu0 0.0
    %115 = vmatprep.subr.mxu0 0.0
    %116 = vmatpush1.msra.mxu0 0.0
    %117 = vmatprep.subr.mxu0 0.0
    %118 = vmatpush1.msra.mxu0 0.0
    %119 = vmatprep.subr.mxu0 0.0
    %120 = vmatpush1.msra.mxu0 0.0
    %121 = vmatprep.subr.mxu0 0.0
    %122 = vmatpush1.msra.mxu0 0.0
    %123 = vmatprep.subr.mxu0 0.0
    %124 = vmatpush1.msra.mxu0 0.0
    %125 = vmatprep.subr.mxu0 0.0
    %126 = vmatpush1.msra.mxu0 0.0
    %127 = vmatprep.subr.mxu0 0.0
    %128 = vmatpush1.msra.mxu0 0.0
    %129 = vmatprep.subr.mxu0 0.0
    %130 = vmatpush1.msra.mxu0 0.0
    %131 = vmatprep.subr.mxu0 0.0
    %132 = vmatpush1.msra.mxu0 0.0
    %133 = vmatprep.subr.mxu0 0.0
    %134 = vmatpush1.msra.mxu0 0.0
    %135 = vmatprep.subr.mxu0 0.0
    %136 = vmatpush1.msra.mxu0 0.0
    %137 = vmatprep.subr.mxu0 0.0
    %138 = vmatpush1.msra.mxu0 0.0
    %139 = vmatprep.subr.mxu0 0.0
    %140 = vmatpush1.msra.mxu0 0.0
    %141 = vmatprep.subr.mxu0 0.0
    %142 = vmatpush1.msra.mxu0 0.0
    %143 = vmatprep.subr.mxu0 0.0
    %144 = vmatpush1.msra.mxu0 0.0
    %145 = vmatprep.subr.mxu0 0.0
    %146 = vmatpush1.msra.mxu0 0.0
    %147 = vmatprep.subr.mxu0 0.0
    %148 = vmatpush1.msra.mxu0 0.0
    %149 = vmatprep.subr.mxu0 0.0
    %150 = vmatpush1.msra.mxu0 0.0
    %151 = vmatprep.subr.mxu0 0.0
    %152 = vmatpush1.msra.mxu0 0.0
    %153 = vmatprep.subr.mxu0 0.0
    %154 = vmatpush1.msra.mxu0 0.0
    %155 = vmatprep.subr.mxu0 0.0
    %156 = vmatpush1.msra.mxu0 0.0
    %157 = vmatprep.subr.mxu0 0.0
    %158 = vmatpush1.msra.mxu0 0.0
    %159 = vmatprep.mubr.f32.mxu0 0.0
    %160 = vmatmul.mubr.f32.gmra.mrb[0].mxu0 %v44
    %v161 = vpop.f32.mrb[0].mxu0
    %v162 = vadd.f32 0.0, %v161
    %v163 = vpop.f32.mrb[0].mxu0
    %164 = vmatprep.mubr.f32.mxu0 0.0
    %165 = vmatmul.mubr.f32.gmra.mrb[0].mxu0 %v47
    %v166 = vpop.f32.mrb[0].mxu0
    %v167 = vadd.f32 0.0, %v166
    %v168 = vpop.f32.mrb[0].mxu0
    %169 = vmatprep.mubr.f32.mxu0 0.0
    %170 = vmatmul.mubr.f32.gmra.mrb[0].mxu0 %v50
    %v171 = vpop.f32.mrb[0].mxu0
    %v172 = vadd.f32 0.0, %v171
    %v173 = vpop.f32.mrb[0].mxu0
    %174 = vmatprep.mubr.f32.mxu0 0.0
    %175 = vmatmul.mubr.f32.gmra.mrb[0].mxu0 %v53
    %v176 = vpop.f32.mrb[0].mxu0
    %v177 = vadd.f32 0.0, %v176
    %v178 = vpop.f32.mrb[0].mxu0
    %179 = vmatprep.mubr.f32.mxu0 0.0
    %180 = vmatmul.mubr.f32.gmra.mrb[0].mxu0 %v56
    %v181 = vpop.f32.mrb[0].mxu0
    %v182 = vadd.f32 0.0, %v181
    %v183 = vpop.f32.mrb[0].mxu0
    %184 = vmatprep.mubr.f32.mxu0 0.0
    %185 = vmatmul.mubr.f32.gmra.mrb[0].mxu0 %v59
    %v186 = vpop.f32.mrb[0].mxu0
    %v187 = vadd.f32 0.0, %v186
    %v188 = vpop.f32.mrb[0].mxu0
    %189 = vmatprep.mubr.f32.mxu0 0.0
    %190 = vmatmul.mubr.f32.gmra.mrb[0].mxu0 %v62
    %v191 = vpop.f32.mrb[0].mxu0
    %v192 = vadd.f32 0.0, %v191
    %v193 = vpop.f32.mrb[0].mxu0
    %194 = vmatprep.mubr.f32.mxu0 0.0
    %195 = vmatmul.mubr.f32.gmra.mrb[0].mxu0 %v65
    %v196 = vpop.f32.mrb[0].mxu0
    %v197 = vadd.f32 0.0, %v196
    %v198 = vpop.f32.mrb[0].mxu0
    %199 = vmatprep.mubr.f32.mxu0 0.0
    %200 = vmatmul.mubr.f32.gmra.mrb[0].mxu0 %v68
    %v201 = vpop.f32.mrb[0].mxu0
    %v202 = vadd.f32 0.0, %v201
    %v203 = vpop.f32.mrb[0].mxu0
    %204 = vmatprep.mubr.f32.mxu0 0.0
    %205 = vmatmul.mubr.f32.gmra.mrb[0].mxu0 %v71
    %v206 = vpop.f32.mrb[0].mxu0
    %v207 = vadd.f32 0.0, %v206
    %v208 = vpop.f32.mrb[0].mxu0
    %209 = vmatprep.mubr.f32.mxu0 0.0
    %210 = vmatmul.mubr.f32.gmra.mrb[0].mxu0 %v74
    %v211 = vpop.f32.mrb[0].mxu0
    %v212 = vadd.f32 0.0, %v211
    %v213 = vpop.f32.mrb[0].mxu0
    %214 = vmatprep.mubr.f32.mxu0 0.0
    %215 = vmatmul.mubr.f32.gmra.mrb[0].mxu0 %v77
    %v216 = vpop.f32.mrb[0].mxu0
    %v217 = vadd.f32 0.0, %v216
    %v218 = vpop.f32.mrb[0].mxu0
    %219 = vmatprep.mubr.f32.mxu0 0.0
    %220 = vmatmul.mubr.f32.gmra.mrb[0].mxu0 %v80
    %v221 = vpop.f32.mrb[0].mxu0
    %v222 = vadd.f32 0.0, %v221
    %v223 = vpop.f32.mrb[0].mxu0
    %224 = vmatprep.mubr.f32.mxu0 0.0
    %225 = vmatmul.mubr.f32.gmra.mrb[0].mxu0 %v83
    %v226 = vpop.f32.mrb[0].mxu0
    %v227 = vadd.f32 0.0, %v226
    %v228 = vpop.f32.mrb[0].mxu0
    %229 = vmatprep.mubr.f32.mxu0 0.0
    %230 = vmatmul.mubr.f32.gmra.mrb[0].mxu0 %v86
    %v231 = vpop.f32.mrb[0].mxu0
    %v232 = vadd.f32 0.0, %v231
    %v233 = vpop.f32.mrb[0].mxu0
    %234 = vmatprep.mubr.f32.mxu0 0.0
    %235 = vmatmul.mubr.f32.gmra.mrb[0].mxu0 %v89
    %v236 = vpop.f32.mrb[0].mxu0
    %v237 = vadd.f32 0.0, %v236
    %v238 = vpop.f32.mrb[0].mxu0
    %239 = vdwg.mxu0
    %v240 = vld [vmem:[%s3] sm:$0x1]
    %v241 = vld [vmem:[%s3 + $0x1] sm:$0x1]
    %v242 = vlaneseq
    %v243 = vshrl.u32 %v242, 7
    %v244 = vsub.s32 0, %v243
    %v245 = vrot.slane %v240, %v244
    %v246 = vmul.f32 %v162, %v245
    %v247 = vmul.f32 %v167, %v245
    %v248 = vmul.f32 %v172, %v245
    %v249 = vmul.f32 %v177, %v245
    %v250 = vmul.f32 %v182, %v245
    %v251 = vmul.f32 %v187, %v245
    %v252 = vmul.f32 %v192, %v245
    %v253 = vmul.f32 %v197, %v245
    %v254 = vmul.f32 %v202, %v245
    %v255 = vmul.f32 %v207, %v245
    %v256 = vmul.f32 %v212, %v245
    %v257 = vmul.f32 %v217, %v245
    %v258 = vmul.f32 %v222, %v245
    %v259 = vmul.f32 %v227, %v245
    %v260 = vmul.f32 %v232, %v245
    %v261 = vmul.f32 %v237, %v245
    %v262 = vlaneseq
    %v263 = vshrl.u32 %v262, 7
    %v264 = vsub.s32 0, %v263
    %v265 = vrot.slane %v241, %v264
    %v266 = vadd.f32 %v246, %v265
    %v267 = vadd.f32 %v247, %v265
    %v268 = vadd.f32 %v248, %v265
    %v269 = vadd.f32 %v249, %v265
    %v270 = vadd.f32 %v250, %v265
    %v271 = vadd.f32 %v251, %v265
    %v272 = vadd.f32 %v252, %v265
    %v273 = vadd.f32 %v253, %v265
    %v274 = vadd.f32 %v254, %v265
    %v275 = vadd.f32 %v255, %v265
    %v276 = vadd.f32 %v256, %v265
    %v277 = vadd.f32 %v257, %v265
    %v278 = vadd.f32 %v258, %v265
    %v279 = vadd.f32 %v259, %v265
    %v280 = vadd.f32 %v260, %v265
    %v281 = vadd.f32 %v261, %v265
    %v282 = vmax.f32 %v266, 0.0
    %v283 = vmax.f32 %v267, 0.0
    %v284 = vmax.f32 %v268, 0.0
    %v285 = vmax.f32 %v269, 0.0
    %v286 = vmax.f32 %v270, 0.0
    %v287 = vmax.f32 %v271, 0.0
    %v288 = vmax.f32 %v272, 0.0
    %v289 = vmax.f32 %v273, 0.0
    %v290 = vmax.f32 %v274, 0.0
    %v291 = vmax.f32 %v275, 0.0
    %v292 = vmax.f32 %v276, 0.0
    %v293 = vmax.f32 %v277, 0.0
    %v294 = vmax.f32 %v278, 0.0
    %v295 = vmax.f32 %v279, 0.0
    %v296 = vmax.f32 %v280, 0.0
    %v297 = vmax.f32 %v281, 0.0
    %298 = vst [vmem:[#allocation2] sm:$0xff] %v282
    %299 = vst [vmem:[#allocation2 + $0x8] sm:$0xff] %v283
    %300 = vst [vmem:[#allocation2 + $0x10] sm:$0xff] %v284
    %301 = vst [vmem:[#allocation2 + $0x18] sm:$0xff] %v285
    %302 = vst [vmem:[#allocation2 + $0x20] sm:$0xff] %v286
    %303 = vst [vmem:[#allocation2 + $0x28] sm:$0xff] %v287
    %304 = vst [vmem:[#allocation2 + $0x30] sm:$0xff] %v288
    %305 = vst [vmem:[#allocation2 + $0x38] sm:$0xff] %v289
    %306 = vst [vmem:[#allocation2 + $0x40] sm:$0xff] %v290
    %307 = vst [vmem:[#allocation2 + $0x48] sm:$0xff] %v291
    %308 = vst [vmem:[#allocation2 + $0x50] sm:$0xff] %v292
    %309 = vst [vmem:[#allocation2 + $0x58] sm:$0xff] %v293
    %310 = vst [vmem:[#allocation2 + $0x60] sm:$0xff] %v294
    %311 = vst [vmem:[#allocation2 + $0x68] sm:$0xff] %v295
    %312 = vst [vmem:[#allocation2 + $0x70] sm:$0xff] %v296
    %313 = vst [vmem:[#allocation2 + $0x78] sm:$0xff] %v297
    %v314 = vld [vmem:[%s1] sm:$0xff]
    %v315 = vld [vmem:[%s1 + $0x8] sm:$0xff]
    %v316 = vld [vmem:[%s1 + $0x10] sm:$0xff]
    %v317 = vld [vmem:[%s1 + $0x18] sm:$0xff]
    %v318 = vld [vmem:[%s1 + $0x20] sm:$0xff]
    %v319 = vld [vmem:[%s1 + $0x28] sm:$0xff]
    %v320 = vld [vmem:[%s1 + $0x30] sm:$0xff]
    %v321 = vld [vmem:[%s1 + $0x38] sm:$0xff]
    %v322 = vld [vmem:[%s1 + $0x40] sm:$0xff]
    %v323 = vld [vmem:[%s1 + $0x48] sm:$0xff]
    %v324 = vld [vmem:[%s1 + $0x50] sm:$0xff]
    %v325 = vld [vmem:[%s1 + $0x58] sm:$0xff]
    %v326 = vld [vmem:[%s1 + $0x60] sm:$0xff]
    %v327 = vld [vmem:[%s1 + $0x68] sm:$0xff]
    %v328 = vld [vmem:[%s1 + $0x70] sm:$0xff]
    %v329 = vld [vmem:[%s1 + $0x78] sm:$0xff]
    %v330 = vld [vmem:[%s4] sm:$0xff]
    %v331 = vld [vmem:[%s4 + $0x8] sm:$0x1]
    %vm332 = vcmask 72704
    %v334 = vsel %vm332, %v314, 0
    %v337 = vsel %vm332, %v315, 0
    %v340 = vsel %vm332, %v316, 0
    %v343 = vsel %vm332, %v317, 0
    %v346 = vsel %vm332, %v318, 0
    %v349 = vsel %vm332, %v319, 0
    %v352 = vsel %vm332, %v320, 0
    %v355 = vsel %vm332, %v321, 0
    %v358 = vsel %vm332, %v322, 0
    %v361 = vsel %vm332, %v323, 0
    %v364 = vsel %vm332, %v324, 0
    %v367 = vsel %vm332, %v325, 0
    %v370 = vsel %vm332, %v326, 0
    %v373 = vsel %vm332, %v327, 0
    %v376 = vsel %vm332, %v328, 0
    %v379 = vsel %vm332, %v329, 0
    %vm381 = vcmask 1040384
    %v383 = vsel %vm381, %v331, 0
    %385 = vmatprep.subr.mxu0 0.0
    %386 = vmatpush1.msra.mxu0 %v330
    %387 = vmatprep.subr.mxu0 0.0
    %388 = vmatpush1.msra.mxu0 %v383
    %389 = vmatprep.subr.mxu0 0.0
    %390 = vmatpush1.msra.mxu0 0.0
    %391 = vmatprep.subr.mxu0 0.0
    %392 = vmatpush1.msra.mxu0 0.0
    %393 = vmatprep.subr.mxu0 0.0
    %394 = vmatpush1.msra.mxu0 0.0
    %395 = vmatprep.subr.mxu0 0.0
    %396 = vmatpush1.msra.mxu0 0.0
    %397 = vmatprep.subr.mxu0 0.0
    %398 = vmatpush1.msra.mxu0 0.0
    %399 = vmatprep.subr.mxu0 0.0
    %400 = vmatpush1.msra.mxu0 0.0
    %401 = vmatprep.subr.mxu0 0.0
    %402 = vmatpush1.msra.mxu0 0.0
    %403 = vmatprep.subr.mxu0 0.0
    %404 = vmatpush1.msra.mxu0 0.0
    %405 = vmatprep.subr.mxu0 0.0
    %406 = vmatpush1.msra.mxu0 0.0
    %407 = vmatprep.subr.mxu0 0.0
    %408 = vmatpush1.msra.mxu0 0.0
    %409 = vmatprep.subr.mxu0 0.0
    %410 = vmatpush1.msra.mxu0 0.0
    %411 = vmatprep.subr.mxu0 0.0
    %412 = vmatpush1.msra.mxu0 0.0
    %413 = vmatprep.subr.mxu0 0.0
    %414 = vmatpush1.msra.mxu0 0.0
    %415 = vmatprep.subr.mxu0 0.0
    %416 = vmatpush1.msra.mxu0 0.0
    %417 = vmatprep.subr.mxu0 0.0
    %418 = vmatpush1.msra.mxu0 0.0
    %419 = vmatprep.subr.mxu0 0.0
    %420 = vmatpush1.msra.mxu0 0.0
    %421 = vmatprep.subr.mxu0 0.0
    %422 = vmatpush1.msra.mxu0 0.0
    %423 = vmatprep.subr.mxu0 0.0
    %424 = vmatpush1.msra.mxu0 0.0
    %425 = vmatprep.subr.mxu0 0.0
    %426 = vmatpush1.msra.mxu0 0.0
    %427 = vmatprep.subr.mxu0 0.0
    %428 = vmatpush1.msra.mxu0 0.0
    %429 = vmatprep.subr.mxu0 0.0
    %430 = vmatpush1.msra.mxu0 0.0
    %431 = vmatprep.subr.mxu0 0.0
    %432 = vmatpush1.msra.mxu0 0.0
    %433 = vmatprep.subr.mxu0 0.0
    %434 = vmatpush1.msra.mxu0 0.0
    %435 = vmatprep.subr.mxu0 0.0
    %436 = vmatpush1.msra.mxu0 0.0
    %437 = vmatprep.subr.mxu0 0.0
    %438 = vmatpush1.msra.mxu0 0.0
    %439 = vmatprep.subr.mxu0 0.0
    %440 = vmatpush1.msra.mxu0 0.0
    %441 = vmatprep.subr.mxu0 0.0
    %442 = vmatpush1.msra.mxu0 0.0
    %443 = vmatprep.subr.mxu0 0.0
    %444 = vmatpush1.msra.mxu0 0.0
    %445 = vmatprep.subr.mxu0 0.0
    %446 = vmatpush1.msra.mxu0 0.0
    %447 = vmatprep.subr.mxu0 0.0
    %448 = vmatpush1.msra.mxu0 0.0
    %449 = vmatprep.mubr.f32.mxu0 0.0
    %450 = vmatmul.mubr.f32.gmra.mrb[0].mxu0 %v334
    %v451 = vpop.f32.mrb[0].mxu0
    %v452 = vadd.f32 0.0, %v451
    %v453 = vpop.f32.mrb[0].mxu0
    %454 = vmatprep.mubr.f32.mxu0 0.0
    %455 = vmatmul.mubr.f32.gmra.mrb[0].mxu0 %v337
    %v456 = vpop.f32.mrb[0].mxu0
    %v457 = vadd.f32 0.0, %v456
    %v458 = vpop.f32.mrb[0].mxu0
    %459 = vmatprep.mubr.f32.mxu0 0.0
    %460 = vmatmul.mubr.f32.gmra.mrb[0].mxu0 %v340
    %v461 = vpop.f32.mrb[0].mxu0
    %v462 = vadd.f32 0.0, %v461
    %v463 = vpop.f32.mrb[0].mxu0
    %464 = vmatprep.mubr.f32.mxu0 0.0
    %465 = vmatmul.mubr.f32.gmra.mrb[0].mxu0 %v343
    %v466 = vpop.f32.mrb[0].mxu0
    %v467 = vadd.f32 0.0, %v466
    %v468 = vpop.f32.mrb[0].mxu0
    %469 = vmatprep.mubr.f32.mxu0 0.0
    %470 = vmatmul.mubr.f32.gmra.mrb[0].mxu0 %v346
    %v471 = vpop.f32.mrb[0].mxu0
    %v472 = vadd.f32 0.0, %v471
    %v473 = vpop.f32.mrb[0].mxu0
    %474 = vmatprep.mubr.f32.mxu0 0.0
    %475 = vmatmul.mubr.f32.gmra.mrb[0].mxu0 %v349
    %v476 = vpop.f32.mrb[0].mxu0
    %v477 = vadd.f32 0.0, %v476
    %v478 = vpop.f32.mrb[0].mxu0
    %479 = vmatprep.mubr.f32.mxu0 0.0
    %480 = vmatmul.mubr.f32.gmra.mrb[0].mxu0 %v352
    %v481 = vpop.f32.mrb[0].mxu0
    %v482 = vadd.f32 0.0, %v481
    %v483 = vpop.f32.mrb[0].mxu0
    %484 = vmatprep.mubr.f32.mxu0 0.0
    %485 = vmatmul.mubr.f32.gmra.mrb[0].mxu0 %v355
    %v486 = vpop.f32.mrb[0].mxu0
    %v487 = vadd.f32 0.0, %v486
    %v488 = vpop.f32.mrb[0].mxu0
    %489 = vmatprep.mubr.f32.mxu0 0.0
    %490 = vmatmul.mubr.f32.gmra.mrb[0].mxu0 %v358
    %v491 = vpop.f32.mrb[0].mxu0
    %v492 = vadd.f32 0.0, %v491
    %v493 = vpop.f32.mrb[0].mxu0
    %494 = vmatprep.mubr.f32.mxu0 0.0
    %495 = vmatmul.mubr.f32.gmra.mrb[0].mxu0 %v361
    %v496 = vpop.f32.mrb[0].mxu0
    %v497 = vadd.f32 0.0, %v496
    %v498 = vpop.f32.mrb[0].mxu0
    %499 = vmatprep.mubr.f32.mxu0 0.0
    %500 = vmatmul.mubr.f32.gmra.mrb[0].mxu0 %v364
    %v501 = vpop.f32.mrb[0].mxu0
    %v502 = vadd.f32 0.0, %v501
    %v503 = vpop.f32.mrb[0].mxu0
    %504 = vmatprep.mubr.f32.mxu0 0.0
    %505 = vmatmul.mubr.f32.gmra.mrb[0].mxu0 %v367
    %v506 = vpop.f32.mrb[0].mxu0
    %v507 = vadd.f32 0.0, %v506
    %v508 = vpop.f32.mrb[0].mxu0
    %509 = vmatprep.mubr.f32.mxu0 0.0
    %510 = vmatmul.mubr.f32.gmra.mrb[0].mxu0 %v370
    %v511 = vpop.f32.mrb[0].mxu0
    %v512 = vadd.f32 0.0, %v511
    %v513 = vpop.f32.mrb[0].mxu0
    %514 = vmatprep.mubr.f32.mxu0 0.0
    %515 = vmatmul.mubr.f32.gmra.mrb[0].mxu0 %v373
    %v516 = vpop.f32.mrb[0].mxu0
    %v517 = vadd.f32 0.0, %v516
    %v518 = vpop.f32.mrb[0].mxu0
    %519 = vmatprep.mubr.f32.mxu0 0.0
    %520 = vmatmul.mubr.f32.gmra.mrb[0].mxu0 %v376
    %v521 = vpop.f32.mrb[0].mxu0
    %v522 = vadd.f32 0.0, %v521
    %v523 = vpop.f32.mrb[0].mxu0
    %524 = vmatprep.mubr.f32.mxu0 0.0
    %525 = vmatmul.mubr.f32.gmra.mrb[0].mxu0 %v379
    %v526 = vpop.f32.mrb[0].mxu0
    %v527 = vadd.f32 0.0, %v526
    %v528 = vpop.f32.mrb[0].mxu0
    %529 = vdwg.mxu0
    %v530 = vadd.f32 %v21, %v452
    %v531 = vadd.f32 %v22, %v457
    %v532 = vadd.f32 %v23, %v462
    %v533 = vadd.f32 %v24, %v467
    %v534 = vadd.f32 %v25, %v472
    %v535 = vadd.f32 %v26, %v477
    %v536 = vadd.f32 %v27, %v482
    %v537 = vadd.f32 %v28, %v487
    %v538 = vadd.f32 %v29, %v492
    %v539 = vadd.f32 %v30, %v497
    %v540 = vadd.f32 %v31, %v502
    %v541 = vadd.f32 %v32, %v507
    %v542 = vadd.f32 %v33, %v512
    %v543 = vadd.f32 %v34, %v517
    %v544 = vadd.f32 %v35, %v522
    %v545 = vadd.f32 %v36, %v527
    %562 = vrot.lane.b32.xlu0 %v530, 124
    %v563 = vpop.permute.xlu0 %562
    %564 = vrot.lane.b32.xlu0 %v531, 124
    %v565 = vpop.permute.xlu0 %564
    %566 = vrot.lane.b32.xlu0 %v532, 124
    %v567 = vpop.permute.xlu0 %566
    %568 = vrot.lane.b32.xlu0 %v533, 124
    %v569 = vpop.permute.xlu0 %568
    %570 = vrot.lane.b32.xlu0 %v534, 124
    %v571 = vpop.permute.xlu0 %570
    %572 = vrot.lane.b32.xlu0 %v535, 124
    %v573 = vpop.permute.xlu0 %572
    %574 = vrot.lane.b32.xlu0 %v536, 124
    %v575 = vpop.permute.xlu0 %574
    %576 = vrot.lane.b32.xlu0 %v537, 124
    %v577 = vpop.permute.xlu0 %576
    %578 = vrot.lane.b32.xlu0 %v538, 124
    %v579 = vpop.permute.xlu0 %578
    %580 = vrot.lane.b32.xlu0 %v539, 124
    %v581 = vpop.permute.xlu0 %580
    %582 = vrot.lane.b32.xlu0 %v540, 124
    %v583 = vpop.permute.xlu0 %582
    %584 = vrot.lane.b32.xlu0 %v541, 124
    %v585 = vpop.permute.xlu0 %584
    %586 = vrot.lane.b32.xlu0 %v542, 124
    %v587 = vpop.permute.xlu0 %586
    %588 = vrot.lane.b32.xlu0 %v543, 124
    %v589 = vpop.permute.xlu0 %588
    %590 = vrot.lane.b32.xlu0 %v544, 124
    %v591 = vpop.permute.xlu0 %590
    %592 = vrot.lane.b32.xlu0 %v545, 124
    %v593 = vpop.permute.xlu0 %592
    %v610 = vmax.f32 %v530, %v563
    %v611 = vmax.f32 %v531, %v565
    %v612 = vmax.f32 %v532, %v567
    %v613 = vmax.f32 %v533, %v569
    %v614 = vmax.f32 %v534, %v571
    %v615 = vmax.f32 %v535, %v573
    %v616 = vmax.f32 %v536, %v575
    %v617 = vmax.f32 %v537, %v577
    %v618 = vmax.f32 %v538, %v579
    %v619 = vmax.f32 %v539, %v581
    %v620 = vmax.f32 %v540, %v583
    %v621 = vmax.f32 %v541, %v585
    %v622 = vmax.f32 %v542, %v587
    %v623 = vmax.f32 %v543, %v589
    %v624 = vmax.f32 %v544, %v591
    %v625 = vmax.f32 %v545, %v593
    %626 = vrot.lane.b32.xlu0 %v530, 120
    %v627 = vpop.permute.xlu0 %626
    %628 = vrot.lane.b32.xlu0 %v531, 120
    %v629 = vpop.permute.xlu0 %628
    %630 = vrot.lane.b32.xlu0 %v532, 120
    %v631 = vpop.permute.xlu0 %630
    %632 = vrot.lane.b32.xlu0 %v533, 120
    %v633 = vpop.permute.xlu0 %632
    %634 = vrot.lane.b32.xlu0 %v534, 120
    %v635 = vpop.permute.xlu0 %634
    %636 = vrot.lane.b32.xlu0 %v535, 120
    %v637 = vpop.permute.xlu0 %636
    %638 = vrot.lane.b32.xlu0 %v536, 120
    %v639 = vpop.permute.xlu0 %638
    %640 = vrot.lane.b32.xlu0 %v537, 120
    %v641 = vpop.permute.xlu0 %640
    %642 = vrot.lane.b32.xlu0 %v538, 120
    %v643 = vpop.permute.xlu0 %642
    %644 = vrot.lane.b32.xlu0 %v539, 120
    %v645 = vpop.permute.xlu0 %644
    %646 = vrot.lane.b32.xlu0 %v540, 120
    %v647 = vpop.permute.xlu0 %646
    %648 = vrot.lane.b32.xlu0 %v541, 120
    %v649 = vpop.permute.xlu0 %648
    %650 = vrot.lane.b32.xlu0 %v542, 120
    %v651 = vpop.permute.xlu0 %650
    %652 = vrot.lane.b32.xlu0 %v543, 120
    %v653 = vpop.permute.xlu0 %652
    %654 = vrot.lane.b32.xlu0 %v544, 120
    %v655 = vpop.permute.xlu0 %654
    %656 = vrot.lane.b32.xlu0 %v545, 120
    %v657 = vpop.permute.xlu0 %656
    %v674 = vmax.f32 %v610, %v627
    %v675 = vmax.f32 %v611, %v629
    %v676 = vmax.f32 %v612, %v631
    %v677 = vmax.f32 %v613, %v633
    %v678 = vmax.f32 %v614, %v635
    %v679 = vmax.f32 %v615, %v637
    %v680 = vmax.f32 %v616, %v639
    %v681 = vmax.f32 %v617, %v641
    %v682 = vmax.f32 %v618, %v643
    %v683 = vmax.f32 %v619, %v645
    %v684 = vmax.f32 %v620, %v647
    %v685 = vmax.f32 %v621, %v649
    %v686 = vmax.f32 %v622, %v651
    %v687 = vmax.f32 %v623, %v653
    %v688 = vmax.f32 %v624, %v655
    %v689 = vmax.f32 %v625, %v657
    %690 = vrot.lane.b32.xlu0 %v530, 116
    %v691 = vpop.permute.xlu0 %690
    %692 = vrot.lane.b32.xlu0 %v531, 116
    %v693 = vpop.permute.xlu0 %692
    %694 = vrot.lane.b32.xlu0 %v532, 116
    %v695 = vpop.permute.xlu0 %694
    %696 = vrot.lane.b32.xlu0 %v533, 116
    %v697 = vpop.permute.xlu0 %696
    %698 = vrot.lane.b32.xlu0 %v534, 116
    %v699 = vpop.permute.xlu0 %698
    %700 = vrot.lane.b32.xlu0 %v535, 116
    %v701 = vpop.permute.xlu0 %700
    %702 = vrot.lane.b32.xlu0 %v536, 116
    %v703 = vpop.permute.xlu0 %702
    %704 = vrot.lane.b32.xlu0 %v537, 116
    %v705 = vpop.permute.xlu0 %704
    %706 = vrot.lane.b32.xlu0 %v538, 116
    %v707 = vpop.permute.xlu0 %706
    %708 = vrot.lane.b32.xlu0 %v539, 116
    %v709 = vpop.permute.xlu0 %708
    %710 = vrot.lane.b32.xlu0 %v540, 116
    %v711 = vpop.permute.xlu0 %710
    %712 = vrot.lane.b32.xlu0 %v541, 116
    %v713 = vpop.permute.xlu0 %712
    %714 = vrot.lane.b32.xlu0 %v542, 116
    %v715 = vpop.permute.xlu0 %714
    %716 = vrot.lane.b32.xlu0 %v543, 116
    %v717 = vpop.permute.xlu0 %716
    %718 = vrot.lane.b32.xlu0 %v544, 116
    %v719 = vpop.permute.xlu0 %718
    %720 = vrot.lane.b32.xlu0 %v545, 116
    %v721 = vpop.permute.xlu0 %720
    %v738 = vmax.f32 %v674, %v691
    %v739 = vmax.f32 %v675, %v693
    %v740 = vmax.f32 %v676, %v695
    %v741 = vmax.f32 %v677, %v697
    %v742 = vmax.f32 %v678, %v699
    %v743 = vmax.f32 %v679, %v701
    %v744 = vmax.f32 %v680, %v703
    %v745 = vmax.f32 %v681, %v705
    %v746 = vmax.f32 %v682, %v707
    %v747 = vmax.f32 %v683, %v709
    %v748 = vmax.f32 %v684, %v711
    %v749 = vmax.f32 %v685, %v713
    %v750 = vmax.f32 %v686, %v715
    %v751 = vmax.f32 %v687, %v717
    %v752 = vmax.f32 %v688, %v719
    %v753 = vmax.f32 %v689, %v721
    %754 = vrot.lane.b32.xlu0 %v530, 112
    %v755 = vpop.permute.xlu0 %754
    %756 = vrot.lane.b32.xlu0 %v531, 112
    %v757 = vpop.permute.xlu0 %756
    %758 = vrot.lane.b32.xlu0 %v532, 112
    %v759 = vpop.permute.xlu0 %758
    %760 = vrot.lane.b32.xlu0 %v533, 112
    %v761 = vpop.permute.xlu0 %760
    %762 = vrot.lane.b32.xlu0 %v534, 112
    %v763 = vpop.permute.xlu0 %762
    %764 = vrot.lane.b32.xlu0 %v535, 112
    %v765 = vpop.permute.xlu0 %764
    %766 = vrot.lane.b32.xlu0 %v536, 112
    %v767 = vpop.permute.xlu0 %766
    %768 = vrot.lane.b32.xlu0 %v537, 112
    %v769 = vpop.permute.xlu0 %768
    %770 = vrot.lane.b32.xlu0 %v538, 112
    %v771 = vpop.permute.xlu0 %770
    %772 = vrot.lane.b32.xlu0 %v539, 112
    %v773 = vpop.permute.xlu0 %772
    %774 = vrot.lane.b32.xlu0 %v540, 112
    %v775 = vpop.permute.xlu0 %774
    %776 = vrot.lane.b32.xlu0 %v541, 112
    %v777 = vpop.permute.xlu0 %776
    %778 = vrot.lane.b32.xlu0 %v542, 112
    %v779 = vpop.permute.xlu0 %778
    %780 = vrot.lane.b32.xlu0 %v543, 112
    %v781 = vpop.permute.xlu0 %780
    %782 = vrot.lane.b32.xlu0 %v544, 112
    %v783 = vpop.permute.xlu0 %782
    %784 = vrot.lane.b32.xlu0 %v545, 112
    %v785 = vpop.permute.xlu0 %784
    %v802 = vmax.f32 %v738, %v755
    %v803 = vmax.f32 %v739, %v757
    %v804 = vmax.f32 %v740, %v759
    %v805 = vmax.f32 %v741, %v761
    %v806 = vmax.f32 %v742, %v763
    %v807 = vmax.f32 %v743, %v765
    %v808 = vmax.f32 %v744, %v767
    %v809 = vmax.f32 %v745, %v769
    %v810 = vmax.f32 %v746, %v771
    %v811 = vmax.f32 %v747, %v773
    %v812 = vmax.f32 %v748, %v775
    %v813 = vmax.f32 %v749, %v777
    %v814 = vmax.f32 %v750, %v779
    %v815 = vmax.f32 %v751, %v781
    %v816 = vmax.f32 %v752, %v783
    %v817 = vmax.f32 %v753, %v785
    %818 = vrot.lane.b32.xlu0 %v530, 108
    %v819 = vpop.permute.xlu0 %818
    %820 = vrot.lane.b32.xlu0 %v531, 108
    %v821 = vpop.permute.xlu0 %820
    %822 = vrot.lane.b32.xlu0 %v532, 108
    %v823 = vpop.permute.xlu0 %822
    %824 = vrot.lane.b32.xlu0 %v533, 108
    %v825 = vpop.permute.xlu0 %824
    %826 = vrot.lane.b32.xlu0 %v534, 108
    %v827 = vpop.permute.xlu0 %826
    %828 = vrot.lane.b32.xlu0 %v535, 108
    %v829 = vpop.permute.xlu0 %828
    %830 = vrot.lane.b32.xlu0 %v536, 108
    %v831 = vpop.permute.xlu0 %830
    %832 = vrot.lane.b32.xlu0 %v537, 108
    %v833 = vpop.permute.xlu0 %832
    %834 = vrot.lane.b32.xlu0 %v538, 108
    %v835 = vpop.permute.xlu0 %834
    %836 = vrot.lane.b32.xlu0 %v539, 108
    %v837 = vpop.permute.xlu0 %836
    %838 = vrot.lane.b32.xlu0 %v540, 108
    %v839 = vpop.permute.xlu0 %838
    %840 = vrot.lane.b32.xlu0 %v541, 108
    %v841 = vpop.permute.xlu0 %840
    %842 = vrot.lane.b32.xlu0 %v542, 108
    %v843 = vpop.permute.xlu0 %842
    %844 = vrot.lane.b32.xlu0 %v543, 108
    %v845 = vpop.permute.xlu0 %844
    %846 = vrot.lane.b32.xlu0 %v544, 108
    %v847 = vpop.permute.xlu0 %846
    %848 = vrot.lane.b32.xlu0 %v545, 108
    %v849 = vpop.permute.xlu0 %848
    %v866 = vmax.f32 %v802, %v819
    %v867 = vmax.f32 %v803, %v821
    %v868 = vmax.f32 %v804, %v823
    %v869 = vmax.f32 %v805, %v825
    %v870 = vmax.f32 %v806, %v827
    %v871 = vmax.f32 %v807, %v829
    %v872 = vmax.f32 %v808, %v831
    %v873 = vmax.f32 %v809, %v833
    %v874 = vmax.f32 %v810, %v835
    %v875 = vmax.f32 %v811, %v837
    %v876 = vmax.f32 %v812, %v839
    %v877 = vmax.f32 %v813, %v841
    %v878 = vmax.f32 %v814, %v843
    %v879 = vmax.f32 %v815, %v845
    %v880 = vmax.f32 %v816, %v847
    %v881 = vmax.f32 %v817, %v849
    %882 = vrot.lane.b32.xlu0 %v530, 104
    %v883 = vpop.permute.xlu0 %882
    %884 = vrot.lane.b32.xlu0 %v531, 104
    %v885 = vpop.permute.xlu0 %884
    %886 = vrot.lane.b32.xlu0 %v532, 104
    %v887 = vpop.permute.xlu0 %886
    %888 = vrot.lane.b32.xlu0 %v533, 104
    %v889 = vpop.permute.xlu0 %888
    %890 = vrot.lane.b32.xlu0 %v534, 104
    %v891 = vpop.permute.xlu0 %890
    %892 = vrot.lane.b32.xlu0 %v535, 104
    %v893 = vpop.permute.xlu0 %892
    %894 = vrot.lane.b32.xlu0 %v536, 104
    %v895 = vpop.permute.xlu0 %894
    %896 = vrot.lane.b32.xlu0 %v537, 104
    %v897 = vpop.permute.xlu0 %896
    %898 = vrot.lane.b32.xlu0 %v538, 104
    %v899 = vpop.permute.xlu0 %898
    %900 = vrot.lane.b32.xlu0 %v539, 104
    %v901 = vpop.permute.xlu0 %900
    %902 = vrot.lane.b32.xlu0 %v540, 104
    %v903 = vpop.permute.xlu0 %902
    %904 = vrot.lane.b32.xlu0 %v541, 104
    %v905 = vpop.permute.xlu0 %904
    %906 = vrot.lane.b32.xlu0 %v542, 104
    %v907 = vpop.permute.xlu0 %906
    %908 = vrot.lane.b32.xlu0 %v543, 104
    %v909 = vpop.permute.xlu0 %908
    %910 = vrot.lane.b32.xlu0 %v544, 104
    %v911 = vpop.permute.xlu0 %910
    %912 = vrot.lane.b32.xlu0 %v545, 104
    %v913 = vpop.permute.xlu0 %912
    %v930 = vmax.f32 %v866, %v883
    %v931 = vmax.f32 %v867, %v885
    %v932 = vmax.f32 %v868, %v887
    %v933 = vmax.f32 %v869, %v889
    %v934 = vmax.f32 %v870, %v891
    %v935 = vmax.f32 %v871, %v893
    %v936 = vmax.f32 %v872, %v895
    %v937 = vmax.f32 %v873, %v897
    %v938 = vmax.f32 %v874, %v899
    %v939 = vmax.f32 %v875, %v901
    %v940 = vmax.f32 %v876, %v903
    %v941 = vmax.f32 %v877, %v905
    %v942 = vmax.f32 %v878, %v907
    %v943 = vmax.f32 %v879, %v909
    %v944 = vmax.f32 %v880, %v911
    %v945 = vmax.f32 %v881, %v913
    %946 = vrot.lane.b32.xlu0 %v530, 100
    %v947 = vpop.permute.xlu0 %946
    %948 = vrot.lane.b32.xlu0 %v531, 100
    %v949 = vpop.permute.xlu0 %948
    %950 = vrot.lane.b32.xlu0 %v532, 100
    %v951 = vpop.permute.xlu0 %950
    %952 = vrot.lane.b32.xlu0 %v533, 100
    %v953 = vpop.permute.xlu0 %952
    %954 = vrot.lane.b32.xlu0 %v534, 100
    %v955 = vpop.permute.xlu0 %954
    %956 = vrot.lane.b32.xlu0 %v535, 100
    %v957 = vpop.permute.xlu0 %956
    %958 = vrot.lane.b32.xlu0 %v536, 100
    %v959 = vpop.permute.xlu0 %958
    %960 = vrot.lane.b32.xlu0 %v537, 100
    %v961 = vpop.permute.xlu0 %960
    %962 = vrot.lane.b32.xlu0 %v538, 100
    %v963 = vpop.permute.xlu0 %962
    %964 = vrot.lane.b32.xlu0 %v539, 100
    %v965 = vpop.permute.xlu0 %964
    %966 = vrot.lane.b32.xlu0 %v540, 100
    %v967 = vpop.permute.xlu0 %966
    %968 = vrot.lane.b32.xlu0 %v541, 100
    %v969 = vpop.permute.xlu0 %968
    %970 = vrot.lane.b32.xlu0 %v542, 100
    %v971 = vpop.permute.xlu0 %970
    %972 = vrot.lane.b32.xlu0 %v543, 100
    %v973 = vpop.permute.xlu0 %972
    %974 = vrot.lane.b32.xlu0 %v544, 100
    %v975 = vpop.permute.xlu0 %974
    %976 = vrot.lane.b32.xlu0 %v545, 100
    %v977 = vpop.permute.xlu0 %976
    %v994 = vmax.f32 %v930, %v947
    %v995 = vmax.f32 %v931, %v949
    %v996 = vmax.f32 %v932, %v951
    %v997 = vmax.f32 %v933, %v953
    %v998 = vmax.f32 %v934, %v955
    %v999 = vmax.f32 %v935, %v957
    %v1000 = vmax.f32 %v936, %v959
    %v1001 = vmax.f32 %v937, %v961
    %v1002 = vmax.f32 %v938, %v963
    %v1003 = vmax.f32 %v939, %v965
    %v1004 = vmax.f32 %v940, %v967
    %v1005 = vmax.f32 %v941, %v969
    %v1006 = vmax.f32 %v942, %v971
    %v1007 = vmax.f32 %v943, %v973
    %v1008 = vmax.f32 %v944, %v975
    %v1009 = vmax.f32 %v945, %v977
    %1010 = vrot.lane.b32.xlu0 %v530, 96
    %v1011 = vpop.permute.xlu0 %1010
    %1012 = vrot.lane.b32.xlu0 %v531, 96
    %v1013 = vpop.permute.xlu0 %1012
    %1014 = vrot.lane.b32.xlu0 %v532, 96
    %v1015 = vpop.permute.xlu0 %1014
    %1016 = vrot.lane.b32.xlu0 %v533, 96
    %v1017 = vpop.permute.xlu0 %1016
    %1018 = vrot.lane.b32.xlu0 %v534, 96
    %v1019 = vpop.permute.xlu0 %1018
    %1020 = vrot.lane.b32.xlu0 %v535, 96
    %v1021 = vpop.permute.xlu0 %1020
    %1022 = vrot.lane.b32.xlu0 %v536, 96
    %v1023 = vpop.permute.xlu0 %1022
    %1024 = vrot.lane.b32.xlu0 %v537, 96
    %v1025 = vpop.permute.xlu0 %1024
    %1026 = vrot.lane.b32.xlu0 %v538, 96
    %v1027 = vpop.permute.xlu0 %1026
    %1028 = vrot.lane.b32.xlu0 %v539, 96
    %v1029 = vpop.permute.xlu0 %1028
    %1030 = vrot.lane.b32.xlu0 %v540, 96
    %v1031 = vpop.permute.xlu0 %1030
    %1032 = vrot.lane.b32.xlu0 %v541, 96
    %v1033 = vpop.permute.xlu0 %1032
    %1034 = vrot.lane.b32.xlu0 %v542, 96
    %v1035 = vpop.permute.xlu0 %1034
    %1036 = vrot.lane.b32.xlu0 %v543, 96
    %v1037 = vpop.permute.xlu0 %1036
    %1038 = vrot.lane.b32.xlu0 %v544, 96
    %v1039 = vpop.permute.xlu0 %1038
    %1040 = vrot.lane.b32.xlu0 %v545, 96
    %v1041 = vpop.permute.xlu0 %1040
    %v1058 = vmax.f32 %v994, %v1011
    %v1059 = vmax.f32 %v995, %v1013
    %v1060 = vmax.f32 %v996, %v1015
    %v1061 = vmax.f32 %v997, %v1017
    %v1062 = vmax.f32 %v998, %v1019
    %v1063 = vmax.f32 %v999, %v1021
    %v1064 = vmax.f32 %v1000, %v1023
    %v1065 = vmax.f32 %v1001, %v1025
    %v1066 = vmax.f32 %v1002, %v1027
    %v1067 = vmax.f32 %v1003, %v1029
    %v1068 = vmax.f32 %v1004, %v1031
    %v1069 = vmax.f32 %v1005, %v1033
    %v1070 = vmax.f32 %v1006, %v1035
    %v1071 = vmax.f32 %v1007, %v1037
    %v1072 = vmax.f32 %v1008, %v1039
    %v1073 = vmax.f32 %v1009, %v1041
    %1090 = vrot.lane.b32.xlu0 %v1058, 8
    %v1091 = vpop.permute.xlu0 %1090
    %1092 = vrot.lane.b32.xlu0 %v1059, 8
    %v1093 = vpop.permute.xlu0 %1092
    %1094 = vrot.lane.b32.xlu0 %v1060, 8
    %v1095 = vpop.permute.xlu0 %1094
    %1096 = vrot.lane.b32.xlu0 %v1061, 8
    %v1097 = vpop.permute.xlu0 %1096
    %1098 = vrot.lane.b32.xlu0 %v1062, 8
    %v1099 = vpop.permute.xlu0 %1098
    %1100 = vrot.lane.b32.xlu0 %v1063, 8
    %v1101 = vpop.permute.xlu0 %1100
    %1102 = vrot.lane.b32.xlu0 %v1064, 8
    %v1103 = vpop.permute.xlu0 %1102
    %1104 = vrot.lane.b32.xlu0 %v1065, 8
    %v1105 = vpop.permute.xlu0 %1104
    %1106 = vrot.lane.b32.xlu0 %v1066, 8
    %v1107 = vpop.permute.xlu0 %1106
    %1108 = vrot.lane.b32.xlu0 %v1067, 8
    %v1109 = vpop.permute.xlu0 %1108
    %1110 = vrot.lane.b32.xlu0 %v1068, 8
    %v1111 = vpop.permute.xlu0 %1110
    %1112 = vrot.lane.b32.xlu0 %v1069, 8
    %v1113 = vpop.permute.xlu0 %1112
    %1114 = vrot.lane.b32.xlu0 %v1070, 8
    %v1115 = vpop.permute.xlu0 %1114
    %1116 = vrot.lane.b32.xlu0 %v1071, 8
    %v1117 = vpop.permute.xlu0 %1116
    %1118 = vrot.lane.b32.xlu0 %v1072, 8
    %v1119 = vpop.permute.xlu0 %1118
    %1120 = vrot.lane.b32.xlu0 %v1073, 8
    %v1121 = vpop.permute.xlu0 %1120
    %vm1138 = vcmask 97344
    %1139 = vst.msk [vmem:[#allocation2] sm:$0xff] %vm1138, %v1091
    %1140 = vst.msk [vmem:[#allocation2 + $0x8] sm:$0xff] %vm1138, %v1093
    %1141 = vst.msk [vmem:[#allocation2 + $0x10] sm:$0xff] %vm1138, %v1095
    %1142 = vst.msk [vmem:[#allocation2 + $0x18] sm:$0xff] %vm1138, %v1097
    %1143 = vst.msk [vmem:[#allocation2 + $0x20] sm:$0xff] %vm1138, %v1099
    %1144 = vst.msk [vmem:[#allocation2 + $0x28] sm:$0xff] %vm1138, %v1101
    %1145 = vst.msk [vmem:[#allocation2 + $0x30] sm:$0xff] %vm1138, %v1103
    %1146 = vst.msk [vmem:[#allocation2 + $0x38] sm:$0xff] %vm1138, %v1105
    %1147 = vst.msk [vmem:[#allocation2 + $0x40] sm:$0xff] %vm1138, %v1107
    %1148 = vst.msk [vmem:[#allocation2 + $0x48] sm:$0xff] %vm1138, %v1109
    %1149 = vst.msk [vmem:[#allocation2 + $0x50] sm:$0xff] %vm1138, %v1111
    %1150 = vst.msk [vmem:[#allocation2 + $0x58] sm:$0xff] %vm1138, %v1113
    %1151 = vst.msk [vmem:[#allocation2 + $0x60] sm:$0xff] %vm1138, %v1115
    %1152 = vst.msk [vmem:[#allocation2 + $0x68] sm:$0xff] %vm1138, %v1117
    %1153 = vst.msk [vmem:[#allocation2 + $0x70] sm:$0xff] %vm1138, %v1119
    %1154 = vst.msk [vmem:[#allocation2 + $0x78] sm:$0xff] %vm1138, %v1121
    // Predicated region
    $region22: #{downsample_forward.3} parent=1 // pred_check
      _
    $region23: #{downsample_forward.3} parent=1 // pred_check_branch
      %1156 = sbr.rel (0) target = $region25
    $region24: #{downsample_forward.3} parent=1 // pred_region
      %s1158 = ssub.s32 2048, 2048
      %1159 = vsyncadd [#allocation3], %s1158
      %s1160 = sshll.u32 [#allocation2], 4
      %s1161 = int_to_ptr.vmem [resolvable:$true] %s1160
      %1166 = dma.vmem_to_hbm [thread:$0]  %s1161, 2048, %s5, [#allocation3], 128, 128, 8
    $region25: #{downsample_forward.3} parent=1 // pred_fallthru
      _
    // Predicated region
    $region26: #{downsample_forward.3} parent=1 // pred_check
      _
    $region27: #{downsample_forward.3} parent=1 // pred_check_branch
      %1168 = sbr.rel (0) target = $region29
    $region28: #{downsample_forward.3} parent=1 // pred_region
      %1169 = dma.done [#allocation3], 2048
    $region29: #{downsample_forward.3} parent=1 // pred_fallthru
      _
    %1170 = vsyncpa [#allocation3], 1

</llo_original>
